<compile_context>
chip_gen: v5e
topology: v5e:2x2
jax: 0.10.0
libtpu: 0.0.40
codegen_flags: <defaults>
</compile_context>

<pallas_src>
import functools

import jax
import jax.numpy as jnp
from jax.experimental import pallas as pl
from jax.experimental.pallas import tpu as pltpu

_EPS = 1e-5            # nn.BatchNorm1d default eps
_MIB = 1024 * 1024


# --------------------------------------------------------------------------------------
# Kernels
# --------------------------------------------------------------------------------------
def bnr_fused_kernel(x_ref, gamma_ref, beta_ref, o_ref, *, inv_count):
    """One-block-per-channel-slab BatchNorm + ReLU.

    x_ref / o_ref: (B, TC, W) -- per-channel stats reduce over axes (0, 2).
    gamma_ref / beta_ref: (TC, 1), f32.
    """
    x = x_ref[...].astype(jnp.float32)

    # Batch-axis slab adds first (pure VPU), then one cross-lane (XLU) reduce per stat.
    mean = jnp.sum(jnp.sum(x, axis=0), axis=-1, keepdims=True) * inv_count      # (TC, 1)
    xc = x - mean                                # only live for the variance reduction
    var = jnp.sum(jnp.sum(xc * xc, axis=0), axis=-1, keepdims=True) * inv_count
    inv_std = jax.lax.rsqrt(var + _EPS)

    # Fold normalize + affine into a single y = x*scale + shift pass.
    scale = gamma_ref[...] * inv_std                                             # (TC, 1)
    shift = beta_ref[...] - mean * scale

    if o_ref.dtype == jnp.bfloat16:
        # bf16 VPU path (v6e/v7x): halves footprint / VALU work of the dominant pass.
        y = x_ref[...] * scale.astype(jnp.bfloat16) + shift.astype(jnp.bfloat16)
        o_ref[...] = jnp.maximum(y, jnp.zeros((), o_ref.dtype))
    else:
        o_ref[...] = jnp.maximum(x * scale + shift, 0.0).astype(o_ref.dtype)


def bnr_stats_kernel(x_ref, gamma_ref, beta_ref, ss_ref, acc_s, acc_q, *,
                     length, tl, inv_count):
    """L-tiled sum / sum-of-squares accumulation; emits per-channel (scale, shift)."""
    li = pl.program_id(1)

    @pl.when(li == 0)
    def _():
        acc_s[...] = jnp.zeros_like(acc_s)
        acc_q[...] = jnp.zeros_like(acc_q)

    x = x_ref[...].astype(jnp.float32)                       # (N, TC, TL)
    if length % tl != 0:                                     # mask the ragged L edge
        col = jax.lax.broadcasted_iota(jnp.int32, x.shape, 2) + li * tl
        x = jnp.where(col < length, x, 0.0)

    xs = jnp.sum(x, axis=0)                                  # batch slab adds (VPU)
    qs = jnp.sum(x * x, axis=0)
    acc_s[...] += jnp.sum(xs, axis=-1, keepdims=True)        # one XLU reduce each
    acc_q[...] += jnp.sum(qs, axis=-1, keepdims=True)

    @pl.when(li == pl.num_programs(1) - 1)
    def _():
        mean = acc_s[...] * inv_count
        # TODO(synk): E[x^2]-mean^2 can lose precision for large-mean activations; a
        # shifted / two-sweep centered variant would be more robust if that matters.
        var = jnp.maximum(acc_q[...] * inv_count - mean * mean, 0.0)
        scale = gamma_ref[...] * jax.lax.rsqrt(var + _EPS)
        ss_ref[:, 0:1] = scale
        ss_ref[:, 1:2] = beta_ref[...] - mean * scale


def bnr_apply_kernel(x_ref, ss_ref, o_ref):
    """y = relu(x * scale + shift) with per-channel (scale, shift) in ss_ref (TC, 2)."""
    scale = ss_ref[:, 0:1]
    shift = ss_ref[:, 1:2]
    y = x_ref[...].astype(jnp.float32) * scale + shift
    o_ref[...] = jnp.maximum(y, 0.0).astype(o_ref.dtype)


# --------------------------------------------------------------------------------------
# Tiling / budget helpers
# --------------------------------------------------------------------------------------
def _tpu_vmem_capacity_bytes():
    try:
        return int(pltpu.get_tpu_info().vmem_capacity_bytes)
    except Exception:            # API unavailable: assume the tightest generation (v7x)
        return 64 * _MIB


def _lane_waste(n):
    padded = -(-n // 128) * 128
    return (padded - n) / padded


def _pick_channel_tile(C, per_channel_bytes, block_budget_bytes):
    """Channel tile for the fused path (whole per-channel slab in one block), or None if
    even an 8-channel slab exceeds the per-block budget (caller uses the two-pass path)."""
    per_channel_bytes = max(per_channel_bytes, 1)
    if C <= 8:
        return C if C * per_channel_bytes <= block_budget_bytes else None
    fit = int(block_budget_bytes // per_channel_bytes) // 8 * 8
    if fit < 8:
        return None
    half = max(8, (C // 2) // 8 * 8)      # >= 2 grid steps -> both v7x TensorCores busy
    return min(fit, half)


# --------------------------------------------------------------------------------------
# Wrappers
# --------------------------------------------------------------------------------------
def _bnr_fused(x3, gamma, beta, tc, vmem_limit_bytes):
    B, C, W = x3.shape
    gamma_c1 = gamma.reshape(C, 1).astype(jnp.float32)
    beta_c1 = beta.reshape(C, 1).astype(jnp.float32)
    kernel = functools.partial(bnr_fused_kernel, inv_count=1.0 / (B * W))
    return pl.pallas_call(
        kernel,
        out_shape=jax.ShapeDtypeStruct((B, C, W), x3.dtype),
        grid=(pl.cdiv(C, tc),),
        in_specs=[
            pl.BlockSpec((B, tc, W), lambda c: (0, c, 0)),
            pl.BlockSpec((tc, 1), lambda c: (c, 0)),
            pl.BlockSpec((tc, 1), lambda c: (c, 0)),
        ],
        out_specs=pl.BlockSpec((B, tc, W), lambda c: (0, c, 0)),
        compiler_params=pltpu.CompilerParams(
            dimension_semantics=("parallel",),
            vmem_limit_bytes=vmem_limit_bytes,
        ),
    )(x3, gamma_c1, beta_c1)


def _bnr_two_pass(x, gamma, beta, block_budget_bytes, vmem_limit_bytes):
    N, C, L = x.shape
    tc = C if C < 8 else 8
    tl_fit = (int(block_budget_bytes // (N * tc * 4)) // 128) * 128
    tl = min(L, max(128, tl_fit))          # lane-dense L tile (or full L if it is smaller)
    # TODO(synk): for extreme N (where even an (N, 8, 128) block exceeds the budget),
    # the batch axis would also need tiling.
    grid = (pl.cdiv(C, tc), pl.cdiv(L, tl))
    gamma_c1 = gamma.reshape(C, 1).astype(jnp.float32)
    beta_c1 = beta.reshape(C, 1).astype(jnp.float32)

    stats_kernel = functools.partial(
        bnr_stats_kernel, length=L, tl=tl, inv_count=1.0 / (N * L))
    scale_shift = pl.pallas_call(
        stats_kernel,
        out_shape=jax.ShapeDtypeStruct((C, 2), jnp.float32),
        grid=grid,
        in_specs=[
            pl.BlockSpec((N, tc, tl), lambda c, l: (0, c, l)),
            pl.BlockSpec((tc, 1), lambda c, l: (c, 0)),
            pl.BlockSpec((tc, 1), lambda c, l: (c, 0)),
        ],
        out_specs=pl.BlockSpec((tc, 2), lambda c, l: (c, 0)),
        scratch_shapes=[pltpu.VMEM((tc, 1), jnp.float32),
                        pltpu.VMEM((tc, 1), jnp.float32)],
        compiler_params=pltpu.CompilerParams(
            dimension_semantics=("parallel", "arbitrary"),
            vmem_limit_bytes=vmem_limit_bytes,
        ),
    )(x, gamma_c1, beta_c1)

    return pl.pallas_call(
        bnr_apply_kernel,
        out_shape=jax.ShapeDtypeStruct((N, C, L), x.dtype),
        grid=grid,
        in_specs=[
            pl.BlockSpec((N, tc, tl), lambda c, l: (0, c, l)),
            pl.BlockSpec((tc, 2), lambda c, l: (c, 0)),
        ],
        out_specs=pl.BlockSpec((N, tc, tl), lambda c, l: (0, c, l)),
        compiler_params=pltpu.CompilerParams(
            dimension_semantics=("parallel", "parallel"),
            vmem_limit_bytes=vmem_limit_bytes,
        ),
    )(x, scale_shift)


def bnr_forward(x, gamma, beta, *, block_budget_bytes=None, vmem_limit_bytes=None):
    """Training-mode BatchNorm1d + ReLU.  x: (N, C, L) or (N, C); gamma/beta: (C,)."""
    if x.ndim == 2:                                 # BatchNorm1d also accepts (N, C)
        return bnr_forward(x[:, :, None], gamma, beta,
                           block_budget_bytes=block_budget_bytes,
                           vmem_limit_bytes=vmem_limit_bytes)[:, :, 0]
    N, C, L = x.shape

    cap = _tpu_vmem_capacity_bytes()
    if vmem_limit_bytes is None:        # 48 MiB on v7x (64 MiB physical), 96 MiB on v5e/v6e
        vmem_limit_bytes = 48 * _MIB if cap <= 64 * _MIB else 96 * _MIB
    if block_budget_bytes is None:      # pipeline holds ~2 in + 2 out blocks + f32 temps
        block_budget_bytes = 6 * _MIB if cap <= 64 * _MIB else 16 * _MIB

    tc = _pick_channel_tile(C, N * L * 4, block_budget_bytes)
    if tc is not None:
        if _lane_waste(L) >= 0.25 and _lane_waste(N * L) < _lane_waste(L):
            # Small / ragged L: per-channel-row layout so the lane axis (N*L) is denser.
            # The wrapper transpose costs one extra pass but avoids mostly-masked stores.
            x_rows = jnp.transpose(x, (1, 0, 2)).reshape(1, C, N * L)
            out = _bnr_fused(x_rows, gamma, beta, tc, vmem_limit_bytes)
            return jnp.transpose(out.reshape(C, N, L), (1, 0, 2))
        return _bnr_fused(x, gamma, beta, tc, vmem_limit_bytes)
    # Even an 8-channel slab blows the block budget: two-pass L-tiled stats + apply.
    return _bnr_two_pass(x, gamma, beta, block_budget_bytes, vmem_limit_bytes)


def bnr_reference(x, gamma, beta, eps=_EPS):
    """Pure-JAX reference of training-mode BatchNorm1d + ReLU (f32 math)."""
    xf = x.astype(jnp.float32)
    mean = jnp.mean(xf, axis=(0, 2), keepdims=True)
    var = jnp.mean((xf - mean) ** 2, axis=(0, 2), keepdims=True)
    y = (xf - mean) * jax.lax.rsqrt(var + eps)
    y = y * gamma.reshape(1, -1, 1) + beta.reshape(1, -1, 1)
    return jnp.maximum(y, 0.0)


# --------------------------------------------------------------------------------------
if __name__ == "__main__":
    key = jax.random.PRNGKey(0)
    k1, k2, k3, k4, k5 = jax.random.split(key, 5)

    # 1) Module-implied small shape: (batch=2, channels=4, length=16), f32 -> fused,
    #    per-channel-row layout (small L).
    N, C, L = 2, 4, 16
    x = jax.random.normal(k1, (N, C, L), dtype=jnp.float32)
    gamma = jax.random.normal(k2, (C,), dtype=jnp.float32) * 0.1 + 1.0
    beta = jax.random.normal(k3, (C,), dtype=jnp.float32) * 0.1
    out = jax.block_until_ready(bnr_forward(x, gamma, beta))
    assert out.shape == (N, C, L) and out.dtype == x.dtype
    assert jnp.allclose(out, bnr_reference(x, gamma, beta), atol=1e-4, rtol=1e-4), \
        "mismatch (fused, row layout)"

    # 2) Lane-dense native NCL layout + multi-tile channel grid.
    N2, C2, L2 = 4, 16, 128
    x2 = jax.random.normal(k4, (N2, C2, L2), dtype=jnp.float32)
    g2 = jnp.ones((C2,), jnp.float32)
    b2 = jnp.zeros((C2,), jnp.float32)
    out2 = jax.block_until_ready(bnr_forward(x2, g2, b2))
    assert jnp.allclose(out2, bnr_reference(x2, g2, b2), atol=1e-4, rtol=1e-4), \
        "mismatch (fused, native layout)"

    # 3) Force the two-pass (L-tiled) fallback, including the ragged-L edge mask.
    N3, C3, L3 = 2, 16, 192
    x3 = jax.random.normal(k5, (N3, C3, L3), dtype=jnp.float32)
    g3 = jnp.full((C3,), 0.5, jnp.float32)
    b3 = jnp.full((C3,), 0.25, jnp.float32)
    out3 = jax.block_until_ready(bnr_forward(x3, g3, b3, block_budget_bytes=4096))
    assert jnp.allclose(out3, bnr_reference(x3, g3, b3), atol=1e-4, rtol=1e-4), \
        "mismatch (two-pass fallback)"

    # 4) bf16 I/O (f32 stats, bf16 scale/shift/ReLU).
    N4, C4, L4 = 2, 8, 256
    x4 = jax.random.normal(k1, (N4, C4, L4), dtype=jnp.float32).astype(jnp.bfloat16)
    g4 = jnp.ones((C4,), jnp.float32)
    b4 = jnp.zeros((C4,), jnp.float32)
    out4 = jax.block_until_ready(bnr_forward(x4, g4, b4))
    assert out4.dtype == jnp.bfloat16
    assert jnp.allclose(out4.astype(jnp.float32), bnr_reference(x4, g4, b4),
                        atol=0.1, rtol=0.05), "mismatch (bf16 fused)"

    print("KERNEL_OK")
</pallas_src>

<mosaic_0001>
module attributes {stable_mosaic.version = 11 : i64} {
  func.func @bnr_fused_kernel(%arg0: i32, %arg1: memref<1x4x32xf32, #tpu.memory_space<vmem>>, %arg2: memref<4x1xf32, #tpu.memory_space<vmem>>, %arg3: memref<4x1xf32, #tpu.memory_space<vmem>>, %arg4: memref<1x4x32xf32, #tpu.memory_space<vmem>>) attributes {dimension_semantics = [#tpu.dimension_semantics<parallel>], iteration_bounds = array<i64: 1>, scalar_prefetch = 0 : i64, scratch_operands = 0 : i64, tpu.core_type = #tpu.core_type<tc>, window_params = [{transform_indices = @transform_0, window_bounds = array<i64: 1, 4, 32>}, {transform_indices = @transform_1, window_bounds = array<i64: 4, 1>}, {transform_indices = @transform_2, window_bounds = array<i64: 4, 1>}, {transform_indices = @transform_3, window_bounds = array<i64: 1, 4, 32>}]} {
    %c0 = arith.constant 0 : index
    %c0_0 = arith.constant 0 : index
    %c0_1 = arith.constant 0 : index
    %0 = vector.load %arg1[%c0, %c0_0, %c0_1] : memref<1x4x32xf32, #tpu.memory_space<vmem>>, vector<1x4x32xf32>
    %cst = arith.constant dense<0.000000e+00> : vector<4x32xf32>
    %1 = vector.multi_reduction <add>, %0, %cst [0] : vector<1x4x32xf32> to vector<4x32xf32>
    %cst_2 = arith.constant dense<0.000000e+00> : vector<4xf32>
    %2 = vector.multi_reduction <add>, %1, %cst_2 [1] : vector<4x32xf32> to vector<4xf32>
    %3 = vector.shape_cast %2 : vector<4xf32> to vector<4x1xf32>
    %cst_3 = arith.constant 3.125000e-02 : f32
    %4 = vector.broadcast %cst_3 : f32 to vector<4x1xf32>
    %5 = arith.mulf %3, %4 : vector<4x1xf32>
    %6 = vector.shape_cast %5 : vector<4x1xf32> to vector<1x4x1xf32>
    %7 = vector.broadcast %6 : vector<1x4x1xf32> to vector<1x4x32xf32>
    %8 = arith.subf %0, %7 : vector<1x4x32xf32>
    %9 = arith.mulf %8, %8 : vector<1x4x32xf32>
    %cst_4 = arith.constant dense<0.000000e+00> : vector<4x32xf32>
    %10 = vector.multi_reduction <add>, %9, %cst_4 [0] : vector<1x4x32xf32> to vector<4x32xf32>
    %cst_5 = arith.constant dense<0.000000e+00> : vector<4xf32>
    %11 = vector.multi_reduction <add>, %10, %cst_5 [1] : vector<4x32xf32> to vector<4xf32>
    %12 = vector.shape_cast %11 : vector<4xf32> to vector<4x1xf32>
    %cst_6 = arith.constant 3.125000e-02 : f32
    %13 = vector.broadcast %cst_6 : f32 to vector<4x1xf32>
    %14 = arith.mulf %12, %13 : vector<4x1xf32>
    %cst_7 = arith.constant 9.99999974E-6 : f32
    %15 = vector.broadcast %cst_7 : f32 to vector<4x1xf32>
    %16 = arith.addf %14, %15 : vector<4x1xf32>
    %17 = math.rsqrt %16 : vector<4x1xf32>
    %c0_8 = arith.constant 0 : index
    %c0_9 = arith.constant 0 : index
    %18 = vector.load %arg2[%c0_8, %c0_9] : memref<4x1xf32, #tpu.memory_space<vmem>>, vector<4x1xf32>
    %19 = arith.mulf %18, %17 : vector<4x1xf32>
    %c0_10 = arith.constant 0 : index
    %c0_11 = arith.constant 0 : index
    %20 = vector.load %arg3[%c0_10, %c0_11] : memref<4x1xf32, #tpu.memory_space<vmem>>, vector<4x1xf32>
    %21 = arith.mulf %5, %19 : vector<4x1xf32>
    %22 = arith.subf %20, %21 : vector<4x1xf32>
    %23 = vector.shape_cast %19 : vector<4x1xf32> to vector<1x4x1xf32>
    %24 = vector.broadcast %23 : vector<1x4x1xf32> to vector<1x4x32xf32>
    %25 = arith.mulf %0, %24 : vector<1x4x32xf32>
    %26 = vector.shape_cast %22 : vector<4x1xf32> to vector<1x4x1xf32>
    %27 = vector.broadcast %26 : vector<1x4x1xf32> to vector<1x4x32xf32>
    %28 = arith.addf %25, %27 : vector<1x4x32xf32>
    %cst_12 = arith.constant 0.000000e+00 : f32
    %29 = vector.broadcast %cst_12 : f32 to vector<1x4x32xf32>
    %30 = arith.maximumf %28, %29 : vector<1x4x32xf32>
    %c0_13 = arith.constant 0 : index
    %c0_14 = arith.constant 0 : index
    %c0_15 = arith.constant 0 : index
    %31 = vector.load %arg4[%c0_13, %c0_14, %c0_15] : memref<1x4x32xf32, #tpu.memory_space<vmem>>, vector<1x4x32xf32>
    tpu.vector_store %arg4[%c0_13, %c0_14, %c0_15], %30 {strides = array<i32>} : memref<1x4x32xf32, #tpu.memory_space<vmem>>, vector<1x4x32xf32>,
    return
  }
  func.func @transform_0(%arg0: i32) -> (i32, i32, i32) {
    %c0_i32 = arith.constant 0 : i32
    %c0_i32_0 = arith.constant 0 : i32
    %c0_i32_1 = arith.constant 0 : i32
    return %c0_i32, %arg0, %c0_i32_0 : i32, i32, i32
  }
  func.func @transform_1(%arg0: i32) -> (i32, i32) {
    %c0_i32 = arith.constant 0 : i32
    %c0_i32_0 = arith.constant 0 : i32
    return %arg0, %c0_i32 : i32, i32
  }
  func.func @transform_2(%arg0: i32) -> (i32, i32) {
    %c0_i32 = arith.constant 0 : i32
    %c0_i32_0 = arith.constant 0 : i32
    return %arg0, %c0_i32 : i32, i32
  }
  func.func @transform_3(%arg0: i32) -> (i32, i32, i32) {
    %c0_i32 = arith.constant 0 : i32
    %c0_i32_0 = arith.constant 0 : i32
    %c0_i32_1 = arith.constant 0 : i32
    return %c0_i32, %arg0, %c0_i32_0 : i32, i32, i32
  }
}

</mosaic_0001>

<llo_original>
// kernel: tpu_custom_call.1
$region0: #{tpu_custom_call.1}
  #allocation0 [shape = 'u32[]', space=smem, size = 0x4, offset = 0x4, fixed_abs, tag = 'smem constant byte address 0x4 - core index']
  #allocation1 [shape = 'u32[72,128]{1,0:T(1,128)}', space=vmem, size = 0x9000, scoped, tag = 'internal scratch']
  %s0 = inlined_call_operand.vmem [shape: f32[1,4,32], index: 0, kind: input, shape index: {}]
  %s1 = inlined_call_operand.vmem [shape: f32[4,1], index: 1, kind: input, shape index: {}]
  %s2 = inlined_call_operand.vmem [shape: f32[4,1], index: 2, kind: input, shape index: {}]
  %s3 = inlined_call_operand.hbm [shape: f32[1,4,32], index: 3, kind: output, shape index: {}]
  %s4 = sld [smem:[#allocation0]]
  $region22: #{tpu_custom_call.1} parent=0
    _
  %s6 = ssub.s32 1, %s4
  %s7 = scalar_select 0, %s6, %s4
  $region1: #{tpu_custom_call.1} parent=0
    #allocation2 [shape = 'u8[2048]{0}', space=vmem, size = 0x800, scoped, tag = 'output window, operand 0, single buffered']
    #allocation3 [shape = 's32[1]{0}', space=sflag, size = 0x4, scoped, tag = 'scoped memory for tpu_custom_call.1']
    %8 = vsyncpa [#allocation3], 0
    // Predicated region
    $region2: #{tpu_custom_call.1} parent=1 // pred_check
      _
    $region3: #{tpu_custom_call.1} parent=1 // pred_check_branch
      %10 = sbr.rel (0) target = $region5
    $region4: #{tpu_custom_call.1} parent=1 // pred_region
      _
    $region5: #{tpu_custom_call.1} parent=1 // pred_fallthru
      _
    // Predicated region
    $region6: #{tpu_custom_call.1} parent=1 // pred_check
      _
    $region7: #{tpu_custom_call.1} parent=1 // pred_check_branch
      %12 = sbr.rel (0) target = $region9
    $region8: #{tpu_custom_call.1} parent=1 // pred_region
      _
    $region9: #{tpu_custom_call.1} parent=1 // pred_fallthru
      _
    // Predicated region
    $region10: #{tpu_custom_call.1} parent=1 // pred_check
      _
    $region11: #{tpu_custom_call.1} parent=1 // pred_check_branch
      %14 = sbr.rel (0) target = $region13
    $region12: #{tpu_custom_call.1} parent=1 // pred_region
      _
    $region13: #{tpu_custom_call.1} parent=1 // pred_fallthru
      _
    %v15 = vld [vmem:[%s0] sm:$0xf]
    %v16 = vadd.f32 %v15, 0.0
    %vm17 = vcmask 257024
    %v18 = vsel %vm17, %v16, 0.0
    %19 = vadd.xlane.f32.xlu0 %v18
    %v20 = vpop.xlane.xlu0 %19
    %v21 = vmul.f32 %v20, 0.03125
    %v22 = vsub.f32 %v15, %v21
    %v23 = vmul.f32 %v22, %v22
    %v24 = vadd.f32 %v23, 0.0
    %v25 = vsel %vm17, %v24, 0.0
    %26 = vadd.xlane.f32.xlu0 %v25
    %v27 = vpop.xlane.xlu0 %26
    %v28 = vmul.f32 %v27, 0.03125
    %v29 = vadd.f32 %v28, 1e-05
    %v30 = vrsqrt.pop %v29
    %v31 = vmul.f32 %v30, %v29
    %v32 = vmul.f32 %v31, %v30
    %v33 = vmul.f32 0.5, %v32
    %v34 = vsub.f32 1.5, %v33
    %v35 = vmul.f32 %v30, %v34
    %vm36 = vweird.f32 %v29
    %vm37 = vweird.f32 %v30
    %vm38 = vmor %vm36, %vm37
    %v39 = vsel %vm38, %v30, %v35
    %v40 = vld [vmem:[%s1] sm:$0xf]
    %v41 = vmul.f32 %v40, %v39
    %v42 = vld [vmem:[%s2] sm:$0xf]
    %v43 = vmul.f32 %v21, %v41
    %v44 = vsub.f32 %v42, %v43
    %46 = vset.pattern.permute.xlu0 0
    %47 = vperm.xlu0 %46, %v41
    %v48 = vpop.permute.xlu0 %47
    %v50 = vmul.f32 %v15, %v48
    %52 = vset.pattern.permute.xlu0 0
    %53 = vperm.xlu0 %52, %v44
    %v54 = vpop.permute.xlu0 %53
    %v56 = vadd.f32 %v50, %v54
    %v57 = vmax.f32 %v56, 0.0
    %58 = vst.msk [vmem:[#allocation2] sm:$0xf] %vm17, %v57
    // Predicated region
    $region14: #{tpu_custom_call.1} parent=1 // pred_check
      _
    $region15: #{tpu_custom_call.1} parent=1 // pred_check_branch
      %60 = sbr.rel (0) target = $region17
    $region16: #{tpu_custom_call.1} parent=1 // pred_region
      %62 = vsyncadd [#allocation3], 0
      %s64 = sshll.u32 [#allocation2], 4
      %s65 = int_to_ptr.vmem [resolvable:$true] %s64
      %s66 = sshll.u32 %s3, 4
      %s67 = int_to_ptr.hbm [resolvable:$true] %s66
      %69 = dma.vmem_to_hbm [thread:$0]  %s65, 64, %s67, [#allocation3]
    $region17: #{tpu_custom_call.1} parent=1 // pred_fallthru
      _
    // Predicated region
    $region18: #{tpu_custom_call.1} parent=1 // pred_check
      _
    $region19: #{tpu_custom_call.1} parent=1 // pred_check_branch
      %71 = sbr.rel (0) target = $region21
    $region20: #{tpu_custom_call.1} parent=1 // pred_region
      %73 = dma.done [#allocation3], 64
    $region21: #{tpu_custom_call.1} parent=1 // pred_fallthru
      _
    %74 = vsyncpa [#allocation3], 1

</llo_original>
